<compile_context>
chip_gen: v7x
topology: tpu7x:2x2x1
jax: 0.10.0
libtpu: 0.0.40
codegen_flags: <defaults>
</compile_context>

<pallas_src>
import jax
import jax.numpy as jnp
from jax.experimental import pallas as pl
from jax.experimental.pallas import tpu as pltpu


def _round_up(v, m):
    return ((v + m - 1) // m) * m


# ---------------------------------------------------------------------------
# Kernel 1: feature projection  H = X @ W   (row-tiled, bf16 in, bf16 out)
# ---------------------------------------------------------------------------
def gcn_project_kernel(x_ref, w_ref, h_ref):
    h_ref[...] = jnp.dot(
        x_ref[...], w_ref[...], preferred_element_type=jnp.float32
    ).astype(h_ref.dtype)


# ---------------------------------------------------------------------------
# Kernel 2: aggregation + activation  y = relu(A_norm @ H)
# grid = (row tiles, contraction tiles); f32 accumulator scratch.
# ---------------------------------------------------------------------------
def gcn_aggregate_kernel(a_ref, h_ref, o_ref, acc_ref):
    k = pl.program_id(1)

    @pl.when(k == 0)
    def _():
        acc_ref[...] = jnp.zeros_like(acc_ref)

    acc_ref[...] += jnp.dot(
        a_ref[...], h_ref[...], preferred_element_type=jnp.float32
    )

    @pl.when(k == pl.num_programs(1) - 1)
    def _():
        # ReLU applied once, on the fully accumulated f32 result.
        o_ref[...] = jnp.maximum(acc_ref[...], 0.0).astype(o_ref.dtype)


def gcn_layer(a_norm, x, w, *, tm=256, tk=512):
    """GCN layer forward: relu(a_norm @ (x @ w)).

    a_norm: [N, N] f32 dense normalized adjacency
    x:      [N, F_in] f32 node features
    w:      [F_in, F_out] f32 weight (PyG GCNConv weight transposed)
    returns [N, F_out] f32
    """
    n, f_in = x.shape
    f_out = w.shape[1]

    # --- padding for tiling / lane-dense output -----------------------------
    f_pad = max(128, _round_up(f_out, 128))          # lane-dense last dim
    tm = max(8, min(tm, _round_up(n, 8)))
    tk = max(128, min(tk, _round_up(n, 128)))
    n_rows = _round_up(n, tm)                        # dst rows (A rows, out rows)
    n_cols = _round_up(n, tk)                        # src cols (A cols, H rows)

    # Zero padding is exact: padded A rows/cols and H rows contribute nothing.
    a_p = jnp.pad(a_norm, ((0, n_rows - n), (0, n_cols - n))).astype(jnp.bfloat16)
    x_p = jnp.pad(x, ((0, n_cols - n), (0, 0))).astype(jnp.bfloat16)
    w_p = jnp.pad(w, ((0, 0), (0, f_pad - f_out))).astype(jnp.bfloat16)

    # --- kernel 1: H = X @ W  (once, not per row tile) -----------------------
    h = pl.pallas_call(
        gcn_project_kernel,
        out_shape=jax.ShapeDtypeStruct((n_cols, f_pad), jnp.bfloat16),
        grid=(n_cols // tk,),
        in_specs=[
            pl.BlockSpec((tk, f_in), lambda i: (i, 0)),
            pl.BlockSpec((f_in, f_pad), lambda i: (0, 0)),
        ],
        out_specs=pl.BlockSpec((tk, f_pad), lambda i: (i, 0)),
        compiler_params=pltpu.CompilerParams(
            dimension_semantics=("parallel",),
        ),
    )(x_p, w_p)

    # --- kernel 2: y = relu(A @ H), tiled with accumulator -------------------
    # Per-buffer-set VMEM budget (double-buffered inputs/outputs + scratch).
    vmem_bytes = (
        2 * tm * tk * 2        # A tiles (bf16)
        + 2 * tk * f_pad * 2   # H tiles (bf16)
        + 2 * tm * f_pad * 4   # output tiles (f32)
        + tm * f_pad * 4       # accumulator scratch (f32)
    )
    vmem_limit = int(min(48 * 1024 * 1024, max(2 * vmem_bytes, 4 * 1024 * 1024)))

    cost = pl.CostEstimate(
        flops=2 * n_rows * n_cols * f_pad,
        transcendentals=0,
        bytes_accessed=(
            n_rows * n_cols * 2                         # A read once
            + (n_rows // tm) * n_cols * f_pad * 2       # H re-read per row tile
            + n_rows * f_pad * 4                        # output write
        ),
    )

    y_pad = pl.pallas_call(
        gcn_aggregate_kernel,
        out_shape=jax.ShapeDtypeStruct((n_rows, f_pad), jnp.float32),
        grid_spec=pltpu.PrefetchScalarGridSpec(
            num_scalar_prefetch=0,
            grid=(n_rows // tm, n_cols // tk),
            in_specs=[
                pl.BlockSpec((tm, tk), lambda i, k: (i, k)),      # A tile
                pl.BlockSpec((tk, f_pad), lambda i, k: (k, 0)),   # H tile
            ],
            out_specs=pl.BlockSpec((tm, f_pad), lambda i, k: (i, 0)),
            scratch_shapes=[pltpu.VMEM((tm, f_pad), jnp.float32)],
        ),
        compiler_params=pltpu.CompilerParams(
            dimension_semantics=("parallel", "arbitrary"),
            vmem_limit_bytes=vmem_limit,
        ),
        cost_estimate=cost,
    )(a_p, h)

    return y_pad[:n, :f_out]


def build_normalized_adjacency(edge_index, num_nodes):
    """Dense PyG-style symmetric GCN normalization (add_self_loops=False)."""
    src = edge_index[0]
    dst = edge_index[1]
    ones = jnp.ones(src.shape[0], dtype=jnp.float32)
    # deg computed over the target (col) index, as in torch_geometric gcn_norm
    deg = jnp.zeros((num_nodes,), jnp.float32).at[dst].add(ones)
    deg_inv_sqrt = jnp.where(deg > 0, 1.0 / jnp.sqrt(deg), 0.0)
    norm = deg_inv_sqrt[src] * deg_inv_sqrt[dst]
    # A_norm[dst, src] accumulates norm (duplicate edges add, matching scatter-add)
    a = jnp.zeros((num_nodes, num_nodes), jnp.float32).at[dst, src].add(norm)
    return a


if __name__ == "__main__":
    # Small deterministic example consistent with the module's forward:
    # x: [num_nodes, input_dim], edge_index: [2, num_edges]
    num_nodes, input_dim, output_dim, num_edges = 512, 32, 32, 2048

    key = jax.random.PRNGKey(0)
    kx, ke_src, ke_dst, kw = jax.random.split(key, 4)

    x = jax.random.normal(kx, (num_nodes, input_dim), dtype=jnp.float32)
    edge_index = jnp.stack(
        [
            jax.random.randint(ke_src, (num_edges,), 0, num_nodes),
            jax.random.randint(ke_dst, (num_edges,), 0, num_nodes),
        ],
        axis=0,
    )

    # GCNConv weight: PyG stores [output_dim, input_dim]; deterministic glorot-like init.
    limit = (6.0 / (input_dim + output_dim)) ** 0.5
    w_pyg = jax.random.uniform(
        kw, (output_dim, input_dim), minval=-limit, maxval=limit, dtype=jnp.float32
    )
    w = w_pyg.T  # kernel consumes [F_in, F_out]

    a_norm = build_normalized_adjacency(edge_index, num_nodes)

    # Small tiles so the (row, contraction) grid is actually exercised here.
    y = gcn_layer(a_norm, x, w, tm=128, tk=256)
    jax.block_until_ready(y)
    assert y.shape == (num_nodes, output_dim)

    # Reference with the same bf16-input / f32-accumulation numerics as the kernel.
    h_ref = jnp.dot(
        x.astype(jnp.bfloat16), w.astype(jnp.bfloat16),
        preferred_element_type=jnp.float32,
    ).astype(jnp.bfloat16)
    y_ref = jnp.maximum(
        jnp.dot(a_norm.astype(jnp.bfloat16), h_ref, preferred_element_type=jnp.float32),
        0.0,
    )
    assert jnp.allclose(y, y_ref, atol=1e-2, rtol=1e-2), float(
        jnp.max(jnp.abs(y - y_ref))
    )

    # Loose sanity check against the pure-f32 math (bf16 inputs, f32 accumulation).
    y_f32 = jnp.maximum(a_norm @ (x @ w), 0.0)
    assert jnp.allclose(y, y_f32, atol=8e-2, rtol=5e-2), float(
        jnp.max(jnp.abs(y - y_f32))
    )

    # TODO(synk): dropout / BatchNorm / skip branches are disabled under the
    # default constructor args (dropout=0, bn=False, skip=False, training=None)
    # and are therefore not part of this kernel.
    print("KERNEL_OK")
</pallas_src>

<mosaic_0001>
module attributes {stable_mosaic.version = 11 : i64} {
  func.func @gcn_project_kernel(%arg0: i32, %arg1: memref<256x32xbf16, #tpu.memory_space<vmem>>, %arg2: memref<32x128xbf16, #tpu.memory_space<vmem>>, %arg3: memref<256x128xbf16, #tpu.memory_space<vmem>>) attributes {dimension_semantics = [#tpu.dimension_semantics<parallel>], iteration_bounds = array<i64: 2>, scalar_prefetch = 0 : i64, scratch_operands = 0 : i64, tpu.core_type = #tpu.core_type<tc>, window_params = [{transform_indices = @transform_0, window_bounds = array<i64: 256, 32>}, {pipeline_mode = #tpu.pipeline_mode<synchronous>, transform_indices = @transform_1, window_bounds = array<i64: 32, 128>}, {transform_indices = @transform_2, window_bounds = array<i64: 256, 128>}]} {
    %c0 = arith.constant 0 : index
    %c0_0 = arith.constant 0 : index
    %0 = vector.load %arg1[%c0, %c0_0] : memref<256x32xbf16, #tpu.memory_space<vmem>>, vector<256x32xbf16>
    %c0_1 = arith.constant 0 : index
    %c0_2 = arith.constant 0 : index
    %1 = vector.load %arg2[%c0_1, %c0_2] : memref<32x128xbf16, #tpu.memory_space<vmem>>, vector<32x128xbf16>
    %cst = arith.constant dense<0.000000e+00> : vector<256x128xf32>
    %2 = tpu.matmul %0, %1, %cst {dimension_numbers = #tpu.dot_dimension_numbers<[1], [0], [0], [1], [0, 0, 1, 1], [], []>} : vector<256x32xbf16>, vector<32x128xbf16>, vector<256x128xf32> -> vector<256x128xf32>
    %3 = arith.truncf %2 : vector<256x128xf32> to vector<256x128xbf16>
    %c0_3 = arith.constant 0 : index
    %c0_4 = arith.constant 0 : index
    %4 = vector.load %arg3[%c0_3, %c0_4] : memref<256x128xbf16, #tpu.memory_space<vmem>>, vector<256x128xbf16>
    tpu.vector_store %arg3[%c0_3, %c0_4], %3 {strides = array<i32>} : memref<256x128xbf16, #tpu.memory_space<vmem>>, vector<256x128xbf16>,
    return
  }
  func.func @transform_0(%arg0: i32) -> (i32, i32) {
    %c0_i32 = arith.constant 0 : i32
    %c0_i32_0 = arith.constant 0 : i32
    return %arg0, %c0_i32 : i32, i32
  }
  func.func @transform_1(%arg0: i32) -> (i32, i32) {
    %c0_i32 = arith.constant 0 : i32
    %c0_i32_0 = arith.constant 0 : i32
    %c0_i32_1 = arith.constant 0 : i32
    return %c0_i32, %c0_i32_0 : i32, i32
  }
  func.func @transform_2(%arg0: i32) -> (i32, i32) {
    %c0_i32 = arith.constant 0 : i32
    %c0_i32_0 = arith.constant 0 : i32
    return %arg0, %c0_i32 : i32, i32
  }
}

</mosaic_0001>

<llo_original>
// kernel: tpu_custom_call.1
$region0: #{tpu_custom_call.1}
  #allocation0 [shape = 'u32[]', space=smem, size = 0x4, offset = 0x4, fixed_abs, tag = 'smem constant byte address 0x4 - core index']
  #allocation1 [shape = 'u32[144,128]{1,0:T(1,128)}', space=vmem, size = 0x12000, scoped, tag = 'internal scratch']
  %s0 = inlined_call_operand.vmem [shape: bf16[512,32], index: 0, kind: input, shape index: {}]
  %s1 = inlined_call_operand.vmem [shape: bf16[32,128], index: 1, kind: input, shape index: {}]
  %s2 = inlined_call_operand.hbm [shape: bf16[512,128], index: 2, kind: output, shape index: {}]
  %s3 = sld [smem:[#allocation0]]
  $region41: #{tpu_custom_call.1} parent=0
    _
  %s5 = ssub.s32 1, %s3
  %s6 = scalar_select 0, %s5, %s3
  $region1: #{tpu_custom_call.1} parent=0
    #allocation2 [shape = 'u8[131072]{0}', space=vmem, size = 0x20000, scoped, tag = 'output window, operand 0']
    #allocation3 [shape = 's32[2]{0}', space=sflag, size = 0x8, scoped, tag = 'scoped memory for tpu_custom_call.1']
    %7 = vsyncpa [#allocation3], 0
    %s8 = scalar_lea.sflag [#allocation3], 1
    %9 = vsyncpa %s8, 0
    loop: start=0, step=1, limit=4
    $region2: #{tpu_custom_call.1} parent=1 // loop_pre_header
      _
    $region3: #{tpu_custom_call.1} parent=1 // loop_header
      %s11 = sphi 0, %s15
      %p12 = scmp.ge.s32.totalorder %s11, 4
      %s21 = sphi 0, %s23
      %s24 = sphi 0, %s21
      %s25 = sphi 0, %s24
      %s41 = sphi 0, %s25
      %s45 = sphi 0, %s45
      %s47 = sphi 0, %s45
      %s48 = sphi 0, %s47
      %s62 = sphi 0, %s48
      %s68 = sphi 0, %s70
      %s71 = sphi 0, %s68
      %s72 = sphi 0, %s71
      %s88 = sphi 0, %s72
    $region4: #{tpu_custom_call.1} parent=1 // loop_header_branch
      %14 = sbr.rel (%p12) target = $region8
    $region5: #{tpu_custom_call.1} parent=1 // loop_body
      %s16 = ssub.s32 %s11, 1
      %s17 = ssub.s32 %s11, 2
      %s18 = sadd.s32 %s11, 1
      %s19 = ssub.s32 %s11, %s18
      %p20 = scmp.eq.s32.totalorder %s19, 0
      %s22 = sadd.s32 %s21, 1
      %s23 = scalar_select %p20, %s21, %s22
      %p26 = pneg %p20
      %p27 = scmp.eq.s32.totalorder %s11, 1
      %p28 = por %p26, %p27
      %p29 = scmp.ne.s32.totalorder %s21, %s24
      %p30 = scmp.eq.s32.totalorder %s11, 0
      %p31 = por %p29, %p30
      %p32 = scmp.ne.s32.totalorder %s21, %s24
      %p33 = scmp.eq.s32.totalorder %s16, 1
      %p34 = por %p32, %p33
      %p35 = scmp.ne.s32.totalorder %s24, %s25
      %p36 = scmp.eq.s32.totalorder %s16, 0
      %p37 = por %p35, %p36
      %p38 = scmp.ne.s32.totalorder %s24, %s25
      %p39 = scmp.eq.s32.totalorder %s17, 1
      %p40 = por %p38, %p39
      %p42 = scmp.ne.s32.totalorder %s25, %s41
      %p43 = scmp.eq.s32.totalorder %s17, 0
      %p44 = por %p42, %p43
      %s46 = sadd.s32 %s45, 1
      %p49 = scmp.eq.s32.totalorder %s11, 1
      %p50 = scmp.ne.s32.totalorder %s45, %s47
      %p51 = scmp.eq.s32.totalorder %s11, 0
      %p52 = por %p50, %p51
      %p53 = scmp.ne.s32.totalorder %s45, %s47
      %p54 = scmp.eq.s32.totalorder %s16, 1
      %p55 = por %p53, %p54
      %p56 = scmp.ne.s32.totalorder %s47, %s48
      %p57 = scmp.eq.s32.totalorder %s16, 0
      %p58 = por %p56, %p57
      %p59 = scmp.ne.s32.totalorder %s47, %s48
      %p60 = scmp.eq.s32.totalorder %s17, 1
      %p61 = por %p59, %p60
      %p63 = scmp.ne.s32.totalorder %s48, %s62
      %p64 = scmp.eq.s32.totalorder %s17, 0
      %p65 = por %p63, %p64
      %s66 = ssub.s32 %s11, %s18
      %p67 = scmp.eq.s32.totalorder %s66, 0
      %s69 = sadd.s32 %s68, 1
      %s70 = scalar_select %p67, %s68, %s69
      %p73 = pneg %p67
      %p74 = scmp.eq.s32.totalorder %s11, 1
      %p75 = por %p73, %p74
      %p76 = scmp.ne.s32.totalorder %s68, %s71
      %p77 = scmp.eq.s32.totalorder %s11, 0
      %p78 = por %p76, %p77
      %p79 = scmp.ne.s32.totalorder %s68, %s71
      %p80 = scmp.eq.s32.totalorder %s16, 1
      %p81 = por %p79, %p80
      %p82 = scmp.ne.s32.totalorder %s71, %s72
      %p83 = scmp.eq.s32.totalorder %s16, 0
      %p84 = por %p82, %p83
      %p85 = scmp.ne.s32.totalorder %s71, %s72
      %p86 = scmp.eq.s32.totalorder %s17, 1
      %p87 = por %p85, %p86
      %p89 = scmp.ne.s32.totalorder %s72, %s88
      %p90 = scmp.eq.s32.totalorder %s17, 0
      %p91 = por %p89, %p90
      %p92 = scmp.le.s32.totalorder 1, %s11
      %p93 = scmp.lt.s32.totalorder %s11, 3
      %p94 = pnand %p92, %p93
      %p95 = pneg %p94
      // Predicated region
      $region9: #{tpu_custom_call.1} parent=5 // pred_check
        _
      $region10: #{tpu_custom_call.1} parent=5 // pred_check_branch
        %97 = sbr.rel (%p94) target = $region12
      $region11: #{tpu_custom_call.1} parent=5 // pred_region
        %s98 = ssub.s32 %s11, 1
        // Predicated region
        $region13: #{tpu_custom_call.1} parent=11 // pred_check
          %p99 = pneg %p58
        $region14: #{tpu_custom_call.1} parent=11 // pred_check_branch
          %101 = sbr.rel (%p99) target = $region16
        $region15: #{tpu_custom_call.1} parent=11 // pred_region
          _
        $region16: #{tpu_custom_call.1} parent=11 // pred_fallthru
          _
      $region12: #{tpu_custom_call.1} parent=5 // pred_fallthru
        _
      %p102 = scmp.lt.s32.totalorder %s11, 2
      // Predicated region
      $region17: #{tpu_custom_call.1} parent=5 // pred_check
        %p103 = pneg %p102
      $region18: #{tpu_custom_call.1} parent=5 // pred_check_branch
        %105 = sbr.rel (%p103) target = $region20
      $region19: #{tpu_custom_call.1} parent=5 // pred_region
        // Predicated region
        $region21: #{tpu_custom_call.1} parent=19 // pred_check
          %p106 = pneg %p31
        $region22: #{tpu_custom_call.1} parent=19 // pred_check_branch
          %108 = sbr.rel (%p106) target = $region24
        $region23: #{tpu_custom_call.1} parent=19 // pred_region
          %s109 = smul.u32 32, %s11
          %p110 = scmp.lt.s32.totalorder %s109, 63
          %s111 = scalar_select %p110, %s109, 63
          %s112 = smul.addr %s111, 4
          %s113 = scalar_lea.vmem %s0, %s112
          %s114 = smul.u32 32, %s11
        $region24: #{tpu_custom_call.1} parent=19 // pred_fallthru
          _
      $region20: #{tpu_custom_call.1} parent=5 // pred_fallthru
        _
      %p115 = scmp.le.s32.totalorder 1, %s11
      %p116 = scmp.lt.s32.totalorder %s11, 3
      %p117 = pnand %p115, %p116
      %p118 = pneg %p117
      // Predicated region
      $region25: #{tpu_custom_call.1} parent=5 // pred_check
        _
      $region26: #{tpu_custom_call.1} parent=5 // pred_check_branch
        %120 = sbr.rel (%p117) target = $region28
      $region27: #{tpu_custom_call.1} parent=5 // pred_region
        %s121 = ssub.s32 %s11, 1
        %s122 = smul.u32 32, %s16
        %p123 = scmp.lt.s32.totalorder %s122, 63
        %s124 = scalar_select %p123, %s122, 63
        %s125 = smul.addr %s124, 4
        %s126 = scalar_lea.vmem %s0, %s125
        %p127 = pneg %p37
        %p128 = pneg %p34
        %p129 = pneg %p58
        %p130 = pneg %p55
        %p131 = pneg %p84
        %p132 = pneg %p81
        %s133 = sand.u32 %s71, 1
        %s134 = scalar_lea.sflag [#allocation3], %s133
        %s135 = sand.u32 %s71, 1
        %s136 = smul.addr %s135, 128
        %s137 = scalar_lea.vmem [#allocation2], %s136
        %s138 = smul.u32 32, %s16
        %p139 = scmp.lt.s32.totalorder %s138, 63
        %s140 = scalar_select %p139, %s138, 63
        %s141 = smul.addr %s140, 4
        %s142 = scalar_lea.vmem %s0, %s141
        %s143 = smul.u32 32, %s16
        %s144 = smul.u32 32, %s16
        %v146 = vld [vmem:[%s142] sm:$0xf]
        %v147 = vld [vmem:[%s142 + $0x4] sm:$0xf]
        %v148 = vld [vmem:[%s142 + $0x8] sm:$0xf]
        %v149 = vld [vmem:[%s142 + $0xc] sm:$0xf]
        %v150 = vld [vmem:[%s142 + $0x10] sm:$0xf]
        %v151 = vld [vmem:[%s142 + $0x14] sm:$0xf]
        %v152 = vld [vmem:[%s142 + $0x18] sm:$0xf]
        %v153 = vld [vmem:[%s142 + $0x1c] sm:$0xf]
        %v154 = vld [vmem:[%s142 + $0x20] sm:$0xf]
        %v155 = vld [vmem:[%s142 + $0x24] sm:$0xf]
        %v156 = vld [vmem:[%s142 + $0x28] sm:$0xf]
        %v157 = vld [vmem:[%s142 + $0x2c] sm:$0xf]
        %v158 = vld [vmem:[%s142 + $0x30] sm:$0xf]
        %v159 = vld [vmem:[%s142 + $0x34] sm:$0xf]
        %v160 = vld [vmem:[%s142 + $0x38] sm:$0xf]
        %v161 = vld [vmem:[%s142 + $0x3c] sm:$0xf]
        %v162 = vld [vmem:[%s142 + $0x40] sm:$0xf]
        %v163 = vld [vmem:[%s142 + $0x44] sm:$0xf]
        %v164 = vld [vmem:[%s142 + $0x48] sm:$0xf]
        %v165 = vld [vmem:[%s142 + $0x4c] sm:$0xf]
        %v166 = vld [vmem:[%s142 + $0x50] sm:$0xf]
        %v167 = vld [vmem:[%s142 + $0x54] sm:$0xf]
        %v168 = vld [vmem:[%s142 + $0x58] sm:$0xf]
        %v169 = vld [vmem:[%s142 + $0x5c] sm:$0xf]
        %v170 = vld [vmem:[%s142 + $0x60] sm:$0xf]
        %v171 = vld [vmem:[%s142 + $0x64] sm:$0xf]
        %v172 = vld [vmem:[%s142 + $0x68] sm:$0xf]
        %v173 = vld [vmem:[%s142 + $0x6c] sm:$0xf]
        %v174 = vld [vmem:[%s142 + $0x70] sm:$0xf]
        %v175 = vld [vmem:[%s142 + $0x74] sm:$0xf]
        %v176 = vld [vmem:[%s142 + $0x78] sm:$0xf]
        %v177 = vld [vmem:[%s142 + $0x7c] sm:$0xf]
        %v178 = vld [vmem:[%s1] sm:$0xf]
        %v179 = vld [vmem:[%s1 + $0x4] sm:$0xf]
        %v180 = vld [vmem:[%s1 + $0x8] sm:$0xf]
        %v181 = vld [vmem:[%s1 + $0xc] sm:$0xf]
        %v214 = vunpack.c.l.b16 %v146
        %v215 = vunpack.c.l.b16 %v147
        %v216 = vunpack.c.l.b16 %v148
        %v217 = vunpack.c.l.b16 %v149
        %v218 = vunpack.c.l.b16 %v150
        %v219 = vunpack.c.l.b16 %v151
        %v220 = vunpack.c.l.b16 %v152
        %v221 = vunpack.c.l.b16 %v153
        %v222 = vunpack.c.l.b16 %v154
        %v223 = vunpack.c.l.b16 %v155
        %v224 = vunpack.c.l.b16 %v156
        %v225 = vunpack.c.l.b16 %v157
        %v226 = vunpack.c.l.b16 %v158
        %v227 = vunpack.c.l.b16 %v159
        %v228 = vunpack.c.l.b16 %v160
        %v229 = vunpack.c.l.b16 %v161
        %v230 = vunpack.c.l.b16 %v162
        %v231 = vunpack.c.l.b16 %v163
        %v232 = vunpack.c.l.b16 %v164
        %v233 = vunpack.c.l.b16 %v165
        %v234 = vunpack.c.l.b16 %v166
        %v235 = vunpack.c.l.b16 %v167
        %v236 = vunpack.c.l.b16 %v168
        %v237 = vunpack.c.l.b16 %v169
        %v238 = vunpack.c.l.b16 %v170
        %v239 = vunpack.c.l.b16 %v171
        %v240 = vunpack.c.l.b16 %v172
        %v241 = vunpack.c.l.b16 %v173
        %v242 = vunpack.c.l.b16 %v174
        %v243 = vunpack.c.l.b16 %v175
        %v244 = vunpack.c.l.b16 %v176
        %v245 = vunpack.c.l.b16 %v177
        %v246 = vpack.c.b16 %v215, %v214
        %v247 = vpack.c.b16 %v217, %v216
        %v248 = vpack.c.b16 %v219, %v218
        %v249 = vpack.c.b16 %v221, %v220
        %v250 = vpack.c.b16 %v223, %v222
        %v251 = vpack.c.b16 %v225, %v224
        %v252 = vpack.c.b16 %v227, %v226
        %v253 = vpack.c.b16 %v229, %v228
        %v254 = vpack.c.b16 %v231, %v230
        %v255 = vpack.c.b16 %v233, %v232
        %v256 = vpack.c.b16 %v235, %v234
        %v257 = vpack.c.b16 %v237, %v236
        %v258 = vpack.c.b16 %v239, %v238
        %v259 = vpack.c.b16 %v241, %v240
        %v260 = vpack.c.b16 %v243, %v242
        %v261 = vpack.c.b16 %v245, %v244
        %v266 = vunpack.c.l.b16 %v178
        %v267 = vunpack.c.l.b16 %v179
        %v268 = vunpack.c.l.b16 %v180
        %v269 = vunpack.c.l.b16 %v181
        %v270 = vpack.c.b16 %v267, %v266
        %v271 = vpack.c.b16 %v269, %v268
        %vm274 = vcmask 261120
        %v276 = vsel %vm274, %v246, 0
        %v279 = vsel %vm274, %v247, 0
        %v282 = vsel %vm274, %v248, 0
        %v285 = vsel %vm274, %v249, 0
        %v288 = vsel %vm274, %v250, 0
        %v291 = vsel %vm274, %v251, 0
        %v294 = vsel %vm274, %v252, 0
        %v297 = vsel %vm274, %v253, 0
        %v300 = vsel %vm274, %v254, 0
        %v303 = vsel %vm274, %v255, 0
        %v306 = vsel %vm274, %v256, 0
        %v309 = vsel %vm274, %v257, 0
        %v312 = vsel %vm274, %v258, 0
        %v315 = vsel %vm274, %v259, 0
        %v318 = vsel %vm274, %v260, 0
        %v321 = vsel %vm274, %v261, 0
        %323 = vmatprep.subr.bf16.mxu0 0
        %324 = vmatpush1.bf16.msra.mxu0 %v270
        %325 = vmatprep.subr.bf16.mxu0 0
        %326 = vmatpush1.bf16.msra.mxu0 %v271
        %327 = vmatprep.subr.bf16.mxu0 0
        %328 = vmatpush1.bf16.msra.mxu0 0
        %329 = vmatprep.subr.bf16.mxu0 0
        %330 = vmatpush1.bf16.msra.mxu0 0
        %331 = vmatprep.subr.bf16.mxu0 0
        %332 = vmatpush1.bf16.msra.mxu0 0
        %333 = vmatprep.subr.bf16.mxu0 0
        %334 = vmatpush1.bf16.msra.mxu0 0
        %335 = vmatprep.subr.bf16.mxu0 0
        %336 = vmatpush1.bf16.msra.mxu0 0
        %337 = vmatprep.subr.bf16.mxu0 0
        %338 = vmatpush1.bf16.msra.mxu0 0
        %339 = vmatprep.subr.bf16.mxu0 0
        %340 = vmatpush1.bf16.msra.mxu0 0
        %341 = vmatprep.subr.bf16.mxu0 0
        %342 = vmatpush1.bf16.msra.mxu0 0
        %343 = vmatprep.subr.bf16.mxu0 0
        %344 = vmatpush1.bf16.msra.mxu0 0
        %345 = vmatprep.subr.bf16.mxu0 0
        %346 = vmatpush1.bf16.msra.mxu0 0
        %347 = vmatprep.subr.bf16.mxu0 0
        %348 = vmatpush1.bf16.msra.mxu0 0
        %349 = vmatprep.subr.bf16.mxu0 0
        %350 = vmatpush1.bf16.msra.mxu0 0
        %351 = vmatprep.subr.bf16.mxu0 0
        %352 = vmatpush1.bf16.msra.mxu0 0
        %353 = vmatprep.subr.bf16.mxu0 0
        %354 = vmatpush1.bf16.msra.mxu0 0
        %355 = vmatprep.mubr.bf16.mxu0 0
        %356 = vmatmul.mubr.bf16.gmra.mrb[0].mxu0 %v276
        %v357 = vpop.f32.mrb[0].mxu0
        %v358 = vadd.f32 0.0, %v357
        %v359 = vpop.f32.mrb[0].mxu0
        %v360 = vpop.f32.mrb[0].mxu0
        %v361 = vadd.f32 0.0, %v360
        %v362 = vpop.f32.mrb[0].mxu0
        %363 = vmatprep.mubr.bf16.mxu0 0
        %364 = vmatmul.mubr.bf16.gmra.mrb[0].mxu0 %v279
        %v365 = vpop.f32.mrb[0].mxu0
        %v366 = vadd.f32 0.0, %v365
        %v367 = vpop.f32.mrb[0].mxu0
        %v368 = vpop.f32.mrb[0].mxu0
        %v369 = vadd.f32 0.0, %v368
        %v370 = vpop.f32.mrb[0].mxu0
        %371 = vmatprep.mubr.bf16.mxu0 0
        %372 = vmatmul.mubr.bf16.gmra.mrb[0].mxu0 %v282
        %v373 = vpop.f32.mrb[0].mxu0
        %v374 = vadd.f32 0.0, %v373
        %v375 = vpop.f32.mrb[0].mxu0
        %v376 = vpop.f32.mrb[0].mxu0
        %v377 = vadd.f32 0.0, %v376
        %v378 = vpop.f32.mrb[0].mxu0
        %379 = vmatprep.mubr.bf16.mxu0 0
        %380 = vmatmul.mubr.bf16.gmra.mrb[0].mxu0 %v285
        %v381 = vpop.f32.mrb[0].mxu0
        %v382 = vadd.f32 0.0, %v381
        %v383 = vpop.f32.mrb[0].mxu0
        %v384 = vpop.f32.mrb[0].mxu0
        %v385 = vadd.f32 0.0, %v384
        %v386 = vpop.f32.mrb[0].mxu0
        %387 = vmatprep.mubr.bf16.mxu0 0
        %388 = vmatmul.mubr.bf16.gmra.mrb[0].mxu0 %v288
        %v389 = vpop.f32.mrb[0].mxu0
        %v390 = vadd.f32 0.0, %v389
        %v391 = vpop.f32.mrb[0].mxu0
        %v392 = vpop.f32.mrb[0].mxu0
        %v393 = vadd.f32 0.0, %v392
        %v394 = vpop.f32.mrb[0].mxu0
        %395 = vmatprep.mubr.bf16.mxu0 0
        %396 = vmatmul.mubr.bf16.gmra.mrb[0].mxu0 %v291
        %v397 = vpop.f32.mrb[0].mxu0
        %v398 = vadd.f32 0.0, %v397
        %v399 = vpop.f32.mrb[0].mxu0
        %v400 = vpop.f32.mrb[0].mxu0
        %v401 = vadd.f32 0.0, %v400
        %v402 = vpop.f32.mrb[0].mxu0
        %403 = vmatprep.mubr.bf16.mxu0 0
        %404 = vmatmul.mubr.bf16.gmra.mrb[0].mxu0 %v294
        %v405 = vpop.f32.mrb[0].mxu0
        %v406 = vadd.f32 0.0, %v405
        %v407 = vpop.f32.mrb[0].mxu0
        %v408 = vpop.f32.mrb[0].mxu0
        %v409 = vadd.f32 0.0, %v408
        %v410 = vpop.f32.mrb[0].mxu0
        %411 = vmatprep.mubr.bf16.mxu0 0
        %412 = vmatmul.mubr.bf16.gmra.mrb[0].mxu0 %v297
        %v413 = vpop.f32.mrb[0].mxu0
        %v414 = vadd.f32 0.0, %v413
        %v415 = vpop.f32.mrb[0].mxu0
        %v416 = vpop.f32.mrb[0].mxu0
        %v417 = vadd.f32 0.0, %v416
        %v418 = vpop.f32.mrb[0].mxu0
        %419 = vmatprep.mubr.bf16.mxu0 0
        %420 = vmatmul.mubr.bf16.gmra.mrb[0].mxu0 %v300
        %v421 = vpop.f32.mrb[0].mxu0
        %v422 = vadd.f32 0.0, %v421
        %v423 = vpop.f32.mrb[0].mxu0
        %v424 = vpop.f32.mrb[0].mxu0
        %v425 = vadd.f32 0.0, %v424
        %v426 = vpop.f32.mrb[0].mxu0
        %427 = vmatprep.mubr.bf16.mxu0 0
        %428 = vmatmul.mubr.bf16.gmra.mrb[0].mxu0 %v303
        %v429 = vpop.f32.mrb[0].mxu0
        %v430 = vadd.f32 0.0, %v429
        %v431 = vpop.f32.mrb[0].mxu0
        %v432 = vpop.f32.mrb[0].mxu0
        %v433 = vadd.f32 0.0, %v432
        %v434 = vpop.f32.mrb[0].mxu0
        %435 = vmatprep.mubr.bf16.mxu0 0
        %436 = vmatmul.mubr.bf16.gmra.mrb[0].mxu0 %v306
        %v437 = vpop.f32.mrb[0].mxu0
        %v438 = vadd.f32 0.0, %v437
        %v439 = vpop.f32.mrb[0].mxu0
        %v440 = vpop.f32.mrb[0].mxu0
        %v441 = vadd.f32 0.0, %v440
        %v442 = vpop.f32.mrb[0].mxu0
        %443 = vmatprep.mubr.bf16.mxu0 0
        %444 = vmatmul.mubr.bf16.gmra.mrb[0].mxu0 %v309
        %v445 = vpop.f32.mrb[0].mxu0
        %v446 = vadd.f32 0.0, %v445
        %v447 = vpop.f32.mrb[0].mxu0
        %v448 = vpop.f32.mrb[0].mxu0
        %v449 = vadd.f32 0.0, %v448
        %v450 = vpop.f32.mrb[0].mxu0
        %451 = vmatprep.mubr.bf16.mxu0 0
        %452 = vmatmul.mubr.bf16.gmra.mrb[0].mxu0 %v312
        %v453 = vpop.f32.mrb[0].mxu0
        %v454 = vadd.f32 0.0, %v453
        %v455 = vpop.f32.mrb[0].mxu0
        %v456 = vpop.f32.mrb[0].mxu0
        %v457 = vadd.f32 0.0, %v456
        %v458 = vpop.f32.mrb[0].mxu0
        %459 = vmatprep.mubr.bf16.mxu0 0
        %460 = vmatmul.mubr.bf16.gmra.mrb[0].mxu0 %v315
        %v461 = vpop.f32.mrb[0].mxu0
        %v462 = vadd.f32 0.0, %v461
        %v463 = vpop.f32.mrb[0].mxu0
        %v464 = vpop.f32.mrb[0].mxu0
        %v465 = vadd.f32 0.0, %v464
        %v466 = vpop.f32.mrb[0].mxu0
        %467 = vmatprep.mubr.bf16.mxu0 0
        %468 = vmatmul.mubr.bf16.gmra.mrb[0].mxu0 %v318
        %v469 = vpop.f32.mrb[0].mxu0
        %v470 = vadd.f32 0.0, %v469
        %v471 = vpop.f32.mrb[0].mxu0
        %v472 = vpop.f32.mrb[0].mxu0
        %v473 = vadd.f32 0.0, %v472
        %v474 = vpop.f32.mrb[0].mxu0
        %475 = vmatprep.mubr.bf16.mxu0 0
        %476 = vmatmul.mubr.bf16.gmra.mrb[0].mxu0 %v321
        %v477 = vpop.f32.mrb[0].mxu0
        %v478 = vadd.f32 0.0, %v477
        %v479 = vpop.f32.mrb[0].mxu0
        %v480 = vpop.f32.mrb[0].mxu0
        %v481 = vadd.f32 0.0, %v480
        %v482 = vpop.f32.mrb[0].mxu0
        %483 = vdwg.mxu0
        %v484 = vpack.c.bf16 %v361, %v358
        %v485 = vpack.c.bf16 %v369, %v366
        %v486 = vpack.c.bf16 %v377, %v374
        %v487 = vpack.c.bf16 %v385, %v382
        %v488 = vpack.c.bf16 %v393, %v390
        %v489 = vpack.c.bf16 %v401, %v398
        %v490 = vpack.c.bf16 %v409, %v406
        %v491 = vpack.c.bf16 %v417, %v414
        %v492 = vpack.c.bf16 %v425, %v422
        %v493 = vpack.c.bf16 %v433, %v430
        %v494 = vpack.c.bf16 %v441, %v438
        %v495 = vpack.c.bf16 %v449, %v446
        %v496 = vpack.c.bf16 %v457, %v454
        %v497 = vpack.c.bf16 %v465, %v462
        %v498 = vpack.c.bf16 %v473, %v470
        %v499 = vpack.c.bf16 %v481, %v478
        %v516 = vunpack.c.l.b16 %v484
        %v517 = vunpack.c.h.b16 %v484
        %v518 = vunpack.c.l.b16 %v485
        %v519 = vunpack.c.h.b16 %v485
        %v520 = vunpack.c.l.b16 %v486
        %v521 = vunpack.c.h.b16 %v486
        %v522 = vunpack.c.l.b16 %v487
        %v523 = vunpack.c.h.b16 %v487
        %v524 = vunpack.c.l.b16 %v488
        %v525 = vunpack.c.h.b16 %v488
        %v526 = vunpack.c.l.b16 %v489
        %v527 = vunpack.c.h.b16 %v489
        %v528 = vunpack.c.l.b16 %v490
        %v529 = vunpack.c.h.b16 %v490
        %v530 = vunpack.c.l.b16 %v491
        %v531 = vunpack.c.h.b16 %v491
        %v532 = vunpack.c.l.b16 %v492
        %v533 = vunpack.c.h.b16 %v492
        %v534 = vunpack.c.l.b16 %v493
        %v535 = vunpack.c.h.b16 %v493
        %v536 = vunpack.c.l.b16 %v494
        %v537 = vunpack.c.h.b16 %v494
        %v538 = vunpack.c.l.b16 %v495
        %v539 = vunpack.c.h.b16 %v495
        %v540 = vunpack.c.l.b16 %v496
        %v541 = vunpack.c.h.b16 %v496
        %v542 = vunpack.c.l.b16 %v497
        %v543 = vunpack.c.h.b16 %v497
        %v544 = vunpack.c.l.b16 %v498
        %v545 = vunpack.c.h.b16 %v498
        %v546 = vunpack.c.l.b16 %v499
        %v547 = vunpack.c.h.b16 %v499
        %v548 = vpack.c.b16 %v516, %v516
        %v549 = vpack.c.b16 %v517, %v517
        %v550 = vpack.c.b16 %v518, %v518
        %v551 = vpack.c.b16 %v519, %v519
        %v552 = vpack.c.b16 %v520, %v520
        %v553 = vpack.c.b16 %v521, %v521
        %v554 = vpack.c.b16 %v522, %v522
        %v555 = vpack.c.b16 %v523, %v523
        %v556 = vpack.c.b16 %v524, %v524
        %v557 = vpack.c.b16 %v525, %v525
        %v558 = vpack.c.b16 %v526, %v526
        %v559 = vpack.c.b16 %v527, %v527
        %v560 = vpack.c.b16 %v528, %v528
        %v561 = vpack.c.b16 %v529, %v529
        %v562 = vpack.c.b16 %v530, %v530
        %v563 = vpack.c.b16 %v531, %v531
        %v564 = vpack.c.b16 %v532, %v532
        %v565 = vpack.c.b16 %v533, %v533
        %v566 = vpack.c.b16 %v534, %v534
        %v567 = vpack.c.b16 %v535, %v535
        %v568 = vpack.c.b16 %v536, %v536
        %v569 = vpack.c.b16 %v537, %v537
        %v570 = vpack.c.b16 %v538, %v538
        %v571 = vpack.c.b16 %v539, %v539
        %v572 = vpack.c.b16 %v540, %v540
        %v573 = vpack.c.b16 %v541, %v541
        %v574 = vpack.c.b16 %v542, %v542
        %v575 = vpack.c.b16 %v543, %v543
        %v576 = vpack.c.b16 %v544, %v544
        %v577 = vpack.c.b16 %v545, %v545
        %v578 = vpack.c.b16 %v546, %v546
        %v579 = vpack.c.b16 %v547, %v547
        %612 = vst [vmem:[%s137] sm:$0xf] %v548
        %613 = vst [vmem:[%s137 + $0x4] sm:$0xf] %v549
        %614 = vst [vmem:[%s137 + $0x8] sm:$0xf] %v550
        %615 = vst [vmem:[%s137 + $0xc] sm:$0xf] %v551
        %616 = vst [vmem:[%s137 + $0x10] sm:$0xf] %v552
        %617 = vst [vmem:[%s137 + $0x14] sm:$0xf] %v553
        %618 = vst [vmem:[%s137 + $0x18] sm:$0xf] %v554
        %619 = vst [vmem:[%s137 + $0x1c] sm:$0xf] %v555
        %620 = vst [vmem:[%s137 + $0x20] sm:$0xf] %v556
        %621 = vst [vmem:[%s137 + $0x24] sm:$0xf] %v557
        %622 = vst [vmem:[%s137 + $0x28] sm:$0xf] %v558
        %623 = vst [vmem:[%s137 + $0x2c] sm:$0xf] %v559
        %624 = vst [vmem:[%s137 + $0x30] sm:$0xf] %v560
        %625 = vst [vmem:[%s137 + $0x34] sm:$0xf] %v561
        %626 = vst [vmem:[%s137 + $0x38] sm:$0xf] %v562
        %627 = vst [vmem:[%s137 + $0x3c] sm:$0xf] %v563
        %628 = vst [vmem:[%s137 + $0x40] sm:$0xf] %v564
        %629 = vst [vmem:[%s137 + $0x44] sm:$0xf] %v565
        %630 = vst [vmem:[%s137 + $0x48] sm:$0xf] %v566
        %631 = vst [vmem:[%s137 + $0x4c] sm:$0xf] %v567
        %632 = vst [vmem:[%s137 + $0x50] sm:$0xf] %v568
        %633 = vst [vmem:[%s137 + $0x54] sm:$0xf] %v569
        %634 = vst [vmem:[%s137 + $0x58] sm:$0xf] %v570
        %635 = vst [vmem:[%s137 + $0x5c] sm:$0xf] %v571
        %636 = vst [vmem:[%s137 + $0x60] sm:$0xf] %v572
        %637 = vst [vmem:[%s137 + $0x64] sm:$0xf] %v573
        %638 = vst [vmem:[%s137 + $0x68] sm:$0xf] %v574
        %639 = vst [vmem:[%s137 + $0x6c] sm:$0xf] %v575
        %640 = vst [vmem:[%s137 + $0x70] sm:$0xf] %v576
        %641 = vst [vmem:[%s137 + $0x74] sm:$0xf] %v577
        %642 = vst [vmem:[%s137 + $0x78] sm:$0xf] %v578
        %643 = vst [vmem:[%s137 + $0x7c] sm:$0xf] %v579
        %s644 = sand.u32 %s71, 1
        %s645 = scalar_lea.sflag [#allocation3], %s644
        %s646 = sand.u32 %s71, 1
        %s647 = smul.addr %s646, 128
        %s648 = scalar_lea.vmem [#allocation2], %s647
        // Predicated region
        $region29: #{tpu_custom_call.1} parent=27 // pred_check
          %p649 = pneg %p81
        $region30: #{tpu_custom_call.1} parent=27 // pred_check_branch
          %651 = sbr.rel (%p649) target = $region32
        $region31: #{tpu_custom_call.1} parent=27 // pred_region
          %s652 = smul.u32 32, %s16
          %s654 = ssub.s32 2048, 2048
          %655 = vsyncadd %s645, %s654
          %s656 = smul.addr %s652, 64
          %s657 = scalar_lea.hbm %s2, %s656
          %s658 = sshll.u32 %s648, 4
          %s659 = int_to_ptr.vmem [resolvable:$true] %s658
          %664 = dma.vmem_to_hbm [thread:$0]  %s659, 2048, %s657, %s645, 64, 64, 4
        $region32: #{tpu_custom_call.1} parent=27 // pred_fallthru
          _
      $region28: #{tpu_custom_call.1} parent=5 // pred_fallthru
        _
      %p665 = scmp.le.s32.totalorder 2, %s11
      // Predicated region
      $region33: #{tpu_custom_call.1} parent=5 // pred_check
        %p666 = pneg %p665
      $region34: #{tpu_custom_call.1} parent=5 // pred_check_branch
        %668 = sbr.rel (%p666) target = $region36
      $region35: #{tpu_custom_call.1} parent=5 // pred_region
        %s669 = ssub.s32 %s11, 2
        // Predicated region
        $region37: #{tpu_custom_call.1} parent=35 // pred_check
          %p670 = pneg %p87
        $region38: #{tpu_custom_call.1} parent=35 // pred_check_branch
          %672 = sbr.rel (%p670) target = $region40
        $region39: #{tpu_custom_call.1} parent=35 // pred_region
          %s673 = sand.u32 %s72, 1
          %s674 = scalar_lea.sflag [#allocation3], %s673
          %s675 = sand.u32 %s72, 1
          %s676 = smul.addr %s675, 128
          %s677 = scalar_lea.vmem [#allocation2], %s676
          %678 = dma.done %s674, 2048
        $region40: #{tpu_custom_call.1} parent=35 // pred_fallthru
          _
      $region36: #{tpu_custom_call.1} parent=5 // pred_fallthru
        _
    $region6: #{tpu_custom_call.1} parent=1 // loop_footer
      %s15 = sadd.s32 1, %s11
    $region7: #{tpu_custom_call.1} parent=1 // loop_footer_branch
      %10 = sbr.rel target = $region3
    $region8: #{tpu_custom_call.1} parent=1 // loop_exit
      _
    %679 = vsyncpa [#allocation3], 1
    %s680 = scalar_lea.sflag [#allocation3], 1
    %681 = vsyncpa %s680, 1

</llo_original>
